<compile_context>
chip_gen: v5e
topology: v5e:2x2
jax: 0.10.0
libtpu: 0.0.40
codegen_flags: <defaults>
</compile_context>

<pallas_src>
from functools import partial

import jax
import jax.numpy as jnp
from jax.experimental import pallas as pl
from jax.experimental.pallas import tpu as pltpu

LANE = 128                               # vreg lane width
SUB = 8                                  # vreg sublane width
_PER_STEP_HBM_BYTES = 4 * 1024 * 1024    # target real HBM data per grid step


def _cdiv(a, b):
    return (a + b - 1) // b


def _round_up(x, m):
    return _cdiv(x, m) * m


def _vmem_limit_bytes():
    """Per-chip scoped-VMEM limit: ~70% of capacity, clamped to [32, 96] MiB."""
    cap = 64 * 1024 * 1024               # conservative default (v7x per-core)
    try:
        info = pltpu.get_tpu_info()
        for name in ("vmem_capacity_bytes", "vmem_bytes"):
            v = getattr(info, name, None)
            if v:
                cap = int(v)
                break
    except Exception:
        pass
    return max(32 * 1024 * 1024, min(int(cap * 0.7), 96 * 1024 * 1024))


def _soft_dice_kernel(x_ref, t_ref, out_ref, acc_i, acc_p, acc_t, *,
                      n_classes, tile_pixels, valid_in_last_tile, smooth):
    """One (batch-block, spatial-tile) grid step.

    x_ref: (bb, C, St, 128) logits     t_ref: (bb, St, 128) integer labels
    out_ref: (bb, C, 1) per-(batch, class) dice terms 2*inter/union
    acc_*:   (bb, C, 1) f32 running sums across the spatial grid axis.
    """
    C = n_classes
    s = pl.program_id(1)
    last = pl.num_programs(1) - 1

    @pl.when(s == 0)
    def _init():
        acc_i[...] = jnp.zeros_like(acc_i)
        acc_p[...] = jnp.zeros_like(acc_p)
        acc_t[...] = jnp.zeros_like(acc_t)

    x = x_ref[...]                                    # (bb, C, St, 128)
    t = t_ref[...].astype(jnp.int32)                  # (bb, St, 128)
    bb, _, st, lane = x.shape

    # Per-pixel softmax over the (leading, non-minor) class axis: C-1
    # elementwise max/adds on fully dense (St, 128) slabs (pure VPU); exp and
    # the approximate reciprocal run on the otherwise-idle EUP.
    xs = [x[:, c].astype(jnp.float32) for c in range(C)]
    m = xs[0]
    for c in range(1, C):
        m = jnp.maximum(m, xs[c])
    es = [jnp.exp(xc - m) for xc in xs]
    denom = es[0]
    for c in range(1, C):
        denom = denom + es[c]
    inv = pl.reciprocal(denom, approx=True)           # EUP vrcp
    ps = [ec * inv for ec in es]                      # per-class probabilities

    def _tile_sum(v):                                 # (bb, St, 128) -> (bb, 1, 1)
        return jnp.sum(jnp.sum(v, axis=2, keepdims=True), axis=1, keepdims=True)

    # Class index along the accumulators' sublane axis; assembles per-class
    # scalar partial sums into a (bb, C, 1) update with a few tiny selects.
    cls_idx = jax.lax.broadcasted_iota(jnp.int32, (bb, C, 1), 1)

    def _assemble(parts):                             # C x (bb,1,1) -> (bb,C,1)
        out = jnp.zeros((bb, C, 1), jnp.float32)
        for c, pc in enumerate(parts):
            out = jnp.where(cls_idx == c, pc, out)
        return out

    i_parts, p_parts, t_parts = [], [], []
    for c in range(C):
        oh_c = (t == c).astype(jnp.float32)           # fused one-hot
        i_parts.append(_tile_sum(ps[c] * oh_c))
        p_parts.append(_tile_sum(ps[c]))              # unmasked hot path
        t_parts.append(_tile_sum(oh_c))
    acc_i[...] += _assemble(i_parts)
    acc_p[...] += _assemble(p_parts)
    acc_t[...] += _assemble(t_parts)

    @pl.when(s == last)
    def _finalize():
        p_mass = acc_p[...]
        if valid_in_last_tile < tile_pixels:
            # Spatial padding lives only in this (last) tile.  Subtract its
            # probability mass exactly; padded targets equal n_classes, so
            # acc_i / acc_t never saw it.
            row = jax.lax.broadcasted_iota(jnp.int32, (st, lane), 0)
            col = jax.lax.broadcasted_iota(jnp.int32, (st, lane), 1)
            is_pad = (row * lane + col) >= valid_in_last_tile
            pad_parts = [_tile_sum(jnp.where(is_pad[None], ps[c], 0.0))
                         for c in range(C)]
            p_mass = p_mass - _assemble(pad_parts)
        inter = acc_i[...] + smooth
        union = p_mass + acc_t[...] + smooth
        out_ref[...] = 2.0 * inter / union


def soft_dice_loss(logits, target, n_classes, smooth=0.01, tile_hw=None):
    """SoftDiceLoss forward. logits: (B, C, H, W); target: (B, H, W) integer labels.

    Accepts f32 or bf16 logits and any integer target dtype (int8 recommended
    on bandwidth-bound chips); the kernel upcasts internally.
    """
    # TODO(synk): n_classes == 1 sigmoid branch of the PyTorch module is not implemented.
    B, C, H, W = logits.shape
    assert C == n_classes and n_classes >= 2
    HW = H * W

    x = logits.reshape(B, C, HW)
    t = target
    if not jnp.issubdtype(t.dtype, jnp.integer):
        t = t.astype(jnp.int32)
    t = t.reshape(B, HW)

    s_total = _cdiv(HW, LANE)                 # 128-pixel rows covering H*W
    vmem_limit = _vmem_limit_bytes()

    # Footprint per 128-pixel row (dense layout -> no hidden sublane padding):
    #   HBM:  one pass over logits + target.
    #   VMEM: double-buffered inputs + ~4 f32 working slabs per class
    #         (upcast logits, exp, probabilities, slack for max/denom/sums).
    hbm_row = LANE * (C * x.dtype.itemsize + t.dtype.itemsize)
    vmem_row = 2 * hbm_row + 4 * C * LANE * 4
    rows_budget = max(SUB, min((vmem_limit // 2) // vmem_row,
                               _PER_STEP_HBM_BYTES // hbm_row))

    if tile_hw is not None:                   # explicit override (tests/tuning)
        assert tile_hw % LANE == 0
        s_tile = min(tile_hw // LANE, s_total)
        if s_tile < s_total:
            assert s_tile % SUB == 0, "multi-tile tile_hw must be a multiple of 1024"
        bb = 1
    elif s_total <= rows_budget:
        s_tile = s_total                      # whole image in one spatial tile
        # Fuse batch elements per step, but keep >= 2 steps on the 'parallel'
        # batch axis so both TensorCores of a v7x chip get work.
        bb_cap = max(1, rows_budget // s_total)
        if B >= 2:
            bb_cap = min(bb_cap, B // 2)
        bb = max(d for d in range(1, B + 1) if B % d == 0 and d <= bb_cap)
    else:
        s_tile = (rows_budget // SUB) * SUB
        bb = 1

    s_pad = _round_up(s_total, s_tile)
    n_sp = s_pad // s_tile
    hw_pad = s_pad * LANE
    tile_px = s_tile * LANE

    if hw_pad != HW:
        # Zero-pad logits (their probability mass is subtracted exactly in the
        # kernel's last-tile correction); pad the target with n_classes so the
        # one-hot never matches a real class on padded pixels.
        x = jnp.pad(x, ((0, 0), (0, 0), (0, hw_pad - HW)))
        t = jnp.pad(t, ((0, 0), (0, hw_pad - HW)), constant_values=n_classes)

    x = x.reshape(B, C, s_pad, LANE)          # dense-spatial minor dims
    t = t.reshape(B, s_pad, LANE)

    kernel = partial(_soft_dice_kernel, n_classes=C, tile_pixels=tile_px,
                     valid_in_last_tile=HW - (n_sp - 1) * tile_px,
                     smooth=float(smooth))

    dice = pl.pallas_call(
        kernel,
        out_shape=jax.ShapeDtypeStruct((B, C, 1), jnp.float32),
        grid_spec=pltpu.PrefetchScalarGridSpec(
            num_scalar_prefetch=0,
            grid=(B // bb, n_sp),
            in_specs=[
                pl.BlockSpec((bb, C, s_tile, LANE), lambda b, s: (b, 0, s, 0)),
                pl.BlockSpec((bb, s_tile, LANE), lambda b, s: (b, s, 0)),
            ],
            out_specs=pl.BlockSpec((bb, C, 1), lambda b, s: (b, 0, 0)),
            scratch_shapes=[pltpu.VMEM((bb, C, 1), jnp.float32)] * 3,
        ),
        compiler_params=pltpu.CompilerParams(
            dimension_semantics=("parallel", "arbitrary"),
            vmem_limit_bytes=vmem_limit),
    )(x, t)

    return 1.0 - jnp.sum(dice) / (float(B) * float(C))


def _reference_soft_dice(logits, target, n_classes, smooth=0.01):
    """Plain-JAX reference mirroring the PyTorch module (multi-class path)."""
    B, C, H, W = logits.shape
    p = jax.nn.softmax(logits, axis=1).reshape(B, C, -1)
    onehot = jax.nn.one_hot(target.reshape(B, -1), n_classes, dtype=jnp.float32)
    onehot = jnp.transpose(onehot, (0, 2, 1))                 # (B, C, HW)
    inter = jnp.sum(p * onehot, axis=2) + smooth
    union = jnp.sum(p, axis=2) + jnp.sum(onehot, axis=2) + smooth
    score = jnp.sum(2.0 * inter / union)
    return 1.0 - score / (float(B) * float(n_classes))


if __name__ == "__main__":
    key = jax.random.PRNGKey(0)
    k1, k2, k3, k4 = jax.random.split(key, 4)

    # Primary check: small lane-aligned shape (single spatial tile per batch
    # block, grid (2, 1)).  Tolerance covers the EUP approximate reciprocal
    # used in the softmax (expected loss-level error ~1e-4 on an O(1) loss).
    B, C, H, W = 2, 4, 16, 16
    logits = jax.random.normal(k1, (B, C, H, W), dtype=jnp.float32)
    target = jax.random.randint(k2, (B, H, W), 0, C, dtype=jnp.int32)
    loss = jax.block_until_ready(soft_dice_loss(logits, target, n_classes=C))
    ref = _reference_soft_dice(logits, target, C)
    assert jnp.allclose(loss, ref, atol=2e-3, rtol=2e-3), (loss, ref)

    # Secondary check: spatial extent that is not a multiple of the forced
    # 1024-pixel tile -> exercises multi-step scratch accumulation and the
    # last-tile padded-mass correction (2048-pixel padded extent, 448 pads).
    B2, C2, H2, W2 = 2, 3, 40, 40
    logits2 = jax.random.normal(k3, (B2, C2, H2, W2), dtype=jnp.float32)
    target2 = jax.random.randint(k4, (B2, H2, W2), 0, C2, dtype=jnp.int32)
    loss2 = jax.block_until_ready(
        soft_dice_loss(logits2, target2, n_classes=C2, tile_hw=1024))
    ref2 = _reference_soft_dice(logits2, target2, C2)
    assert jnp.allclose(loss2, ref2, atol=2e-3, rtol=2e-3), (loss2, ref2)

    print("KERNEL_OK")
</pallas_src>

<mosaic_0001>
module attributes {stable_mosaic.version = 11 : i64} {
  func.func @_soft_dice_kernel(%arg0: i32, %arg1: i32, %arg2: memref<1x4x2x128xf32, #tpu.memory_space<vmem>>, %arg3: memref<1x2x128xi32, #tpu.memory_space<vmem>>, %arg4: memref<1x4x1xf32, #tpu.memory_space<vmem>>, %arg5: memref<1x4x1xf32, #tpu.memory_space<vmem>>, %arg6: memref<1x4x1xf32, #tpu.memory_space<vmem>>, %arg7: memref<1x4x1xf32, #tpu.memory_space<vmem>>) attributes {dimension_semantics = [#tpu.dimension_semantics<parallel>, #tpu.dimension_semantics<arbitrary>], iteration_bounds = array<i64: 2, 1>, scalar_prefetch = 0 : i64, scratch_operands = 3 : i64, tpu.core_type = #tpu.core_type<tc>, window_params = [{transform_indices = @transform_0, window_bounds = array<i64: 1, 4, 2, 128>}, {transform_indices = @transform_1, window_bounds = array<i64: 1, 2, 128>}, {transform_indices = @transform_2, window_bounds = array<i64: 1, 4, 1>}]} {
    %c0_i32 = arith.constant 0 : i32
    %0 = arith.cmpi eq, %arg1, %c0_i32 : i32
    %1 = arith.extui %0 : i1 to i32
    %c0_i32_0 = arith.constant 0 : i32
    %2 = arith.cmpi ne, %1, %c0_i32_0 : i32
    scf.if %2 {
      %cst_66 = arith.constant 0.000000e+00 : f32
      %176 = vector.broadcast %cst_66 : f32 to vector<1x4x1xf32>
      %c0_67 = arith.constant 0 : index
      %c0_68 = arith.constant 0 : index
      %c0_69 = arith.constant 0 : index
      %177 = vector.load %arg5[%c0_67, %c0_68, %c0_69] : memref<1x4x1xf32, #tpu.memory_space<vmem>>, vector<1x4x1xf32>
      tpu.vector_store %arg5[%c0_67, %c0_68, %c0_69], %176 {strides = array<i32>} : memref<1x4x1xf32, #tpu.memory_space<vmem>>, vector<1x4x1xf32>,
      %cst_70 = arith.constant 0.000000e+00 : f32
      %178 = vector.broadcast %cst_70 : f32 to vector<1x4x1xf32>
      %c0_71 = arith.constant 0 : index
      %c0_72 = arith.constant 0 : index
      %c0_73 = arith.constant 0 : index
      %179 = vector.load %arg6[%c0_71, %c0_72, %c0_73] : memref<1x4x1xf32, #tpu.memory_space<vmem>>, vector<1x4x1xf32>
      tpu.vector_store %arg6[%c0_71, %c0_72, %c0_73], %178 {strides = array<i32>} : memref<1x4x1xf32, #tpu.memory_space<vmem>>, vector<1x4x1xf32>,
      %cst_74 = arith.constant 0.000000e+00 : f32
      %180 = vector.broadcast %cst_74 : f32 to vector<1x4x1xf32>
      %c0_75 = arith.constant 0 : index
      %c0_76 = arith.constant 0 : index
      %c0_77 = arith.constant 0 : index
      %181 = vector.load %arg7[%c0_75, %c0_76, %c0_77] : memref<1x4x1xf32, #tpu.memory_space<vmem>>, vector<1x4x1xf32>
      tpu.vector_store %arg7[%c0_75, %c0_76, %c0_77], %180 {strides = array<i32>} : memref<1x4x1xf32, #tpu.memory_space<vmem>>, vector<1x4x1xf32>,
    } else {
    }
    %c0 = arith.constant 0 : index
    %c0_1 = arith.constant 0 : index
    %c0_2 = arith.constant 0 : index
    %c0_3 = arith.constant 0 : index
    %3 = vector.load %arg2[%c0, %c0_1, %c0_2, %c0_3] : memref<1x4x2x128xf32, #tpu.memory_space<vmem>>, vector<1x4x2x128xf32>
    %c0_4 = arith.constant 0 : index
    %c0_5 = arith.constant 0 : index
    %c0_6 = arith.constant 0 : index
    %4 = vector.load %arg3[%c0_4, %c0_5, %c0_6] : memref<1x2x128xi32, #tpu.memory_space<vmem>>, vector<1x2x128xi32>
    %5 = vector.extract_strided_slice %3 {offsets = [0, 0, 0, 0], sizes = [1, 1, 2, 128], strides = [1, 1, 1, 1]} : vector<1x4x2x128xf32> to vector<1x1x2x128xf32>
    %6 = vector.shape_cast %5 : vector<1x1x2x128xf32> to vector<1x2x128xf32>
    %7 = vector.extract_strided_slice %3 {offsets = [0, 1, 0, 0], sizes = [1, 1, 2, 128], strides = [1, 1, 1, 1]} : vector<1x4x2x128xf32> to vector<1x1x2x128xf32>
    %8 = vector.shape_cast %7 : vector<1x1x2x128xf32> to vector<1x2x128xf32>
    %9 = vector.extract_strided_slice %3 {offsets = [0, 2, 0, 0], sizes = [1, 1, 2, 128], strides = [1, 1, 1, 1]} : vector<1x4x2x128xf32> to vector<1x1x2x128xf32>
    %10 = vector.shape_cast %9 : vector<1x1x2x128xf32> to vector<1x2x128xf32>
    %11 = vector.extract_strided_slice %3 {offsets = [0, 3, 0, 0], sizes = [1, 1, 2, 128], strides = [1, 1, 1, 1]} : vector<1x4x2x128xf32> to vector<1x1x2x128xf32>
    %12 = vector.shape_cast %11 : vector<1x1x2x128xf32> to vector<1x2x128xf32>
    %13 = arith.maximumf %6, %8 : vector<1x2x128xf32>
    %14 = arith.maximumf %13, %10 : vector<1x2x128xf32>
    %15 = arith.maximumf %14, %12 : vector<1x2x128xf32>
    %16 = arith.subf %6, %15 : vector<1x2x128xf32>
    %17 = math.exp %16 : vector<1x2x128xf32>
    %18 = arith.subf %8, %15 : vector<1x2x128xf32>
    %19 = math.exp %18 : vector<1x2x128xf32>
    %20 = arith.subf %10, %15 : vector<1x2x128xf32>
    %21 = math.exp %20 : vector<1x2x128xf32>
    %22 = arith.subf %12, %15 : vector<1x2x128xf32>
    %23 = math.exp %22 : vector<1x2x128xf32>
    %24 = arith.addf %17, %19 : vector<1x2x128xf32>
    %25 = arith.addf %24, %21 : vector<1x2x128xf32>
    %26 = arith.addf %25, %23 : vector<1x2x128xf32>
    %27 = tpu.reciprocal %26 {approx = true} : vector<1x2x128xf32> -> vector<1x2x128xf32>
    %28 = arith.mulf %17, %27 : vector<1x2x128xf32>
    %29 = arith.mulf %19, %27 : vector<1x2x128xf32>
    %30 = arith.mulf %21, %27 : vector<1x2x128xf32>
    %31 = arith.mulf %23, %27 : vector<1x2x128xf32>
    %32 = tpu.iota {dimensions = array<i32: 1>} : vector<1x4x1xi32>
    %c0_i32_7 = arith.constant 0 : i32
    %33 = vector.broadcast %c0_i32_7 : i32 to vector<1x2x128xi32>
    %34 = arith.cmpi eq, %4, %33 : vector<1x2x128xi32>
    %35 = arith.extui %34 : vector<1x2x128xi1> to vector<1x2x128xi32>
    %36 = arith.sitofp %35 : vector<1x2x128xi32> to vector<1x2x128xf32>
    %37 = arith.mulf %28, %36 : vector<1x2x128xf32>
    %cst = arith.constant dense<0.000000e+00> : vector<1x2xf32>
    %38 = vector.multi_reduction <add>, %37, %cst [2] : vector<1x2x128xf32> to vector<1x2xf32>
    %39 = vector.shape_cast %38 : vector<1x2xf32> to vector<1x2x1xf32>
    %cst_8 = arith.constant dense<0.000000e+00> : vector<1x1xf32>
    %40 = vector.multi_reduction <add>, %39, %cst_8 [1] : vector<1x2x1xf32> to vector<1x1xf32>
    %41 = vector.shape_cast %40 : vector<1x1xf32> to vector<1x1x1xf32>
    %cst_9 = arith.constant dense<0.000000e+00> : vector<1x2xf32>
    %42 = vector.multi_reduction <add>, %28, %cst_9 [2] : vector<1x2x128xf32> to vector<1x2xf32>
    %43 = vector.shape_cast %42 : vector<1x2xf32> to vector<1x2x1xf32>
    %cst_10 = arith.constant dense<0.000000e+00> : vector<1x1xf32>
    %44 = vector.multi_reduction <add>, %43, %cst_10 [1] : vector<1x2x1xf32> to vector<1x1xf32>
    %45 = vector.shape_cast %44 : vector<1x1xf32> to vector<1x1x1xf32>
    %cst_11 = arith.constant dense<0.000000e+00> : vector<1x2xf32>
    %46 = vector.multi_reduction <add>, %36, %cst_11 [2] : vector<1x2x128xf32> to vector<1x2xf32>
    %47 = vector.shape_cast %46 : vector<1x2xf32> to vector<1x2x1xf32>
    %cst_12 = arith.constant dense<0.000000e+00> : vector<1x1xf32>
    %48 = vector.multi_reduction <add>, %47, %cst_12 [1] : vector<1x2x1xf32> to vector<1x1xf32>
    %49 = vector.shape_cast %48 : vector<1x1xf32> to vector<1x1x1xf32>
    %c1_i32 = arith.constant 1 : i32
    %50 = vector.broadcast %c1_i32 : i32 to vector<1x2x128xi32>
    %51 = arith.cmpi eq, %4, %50 : vector<1x2x128xi32>
    %52 = arith.extui %51 : vector<1x2x128xi1> to vector<1x2x128xi32>
    %53 = arith.sitofp %52 : vector<1x2x128xi32> to vector<1x2x128xf32>
    %54 = arith.mulf %29, %53 : vector<1x2x128xf32>
    %cst_13 = arith.constant dense<0.000000e+00> : vector<1x2xf32>
    %55 = vector.multi_reduction <add>, %54, %cst_13 [2] : vector<1x2x128xf32> to vector<1x2xf32>
    %56 = vector.shape_cast %55 : vector<1x2xf32> to vector<1x2x1xf32>
    %cst_14 = arith.constant dense<0.000000e+00> : vector<1x1xf32>
    %57 = vector.multi_reduction <add>, %56, %cst_14 [1] : vector<1x2x1xf32> to vector<1x1xf32>
    %58 = vector.shape_cast %57 : vector<1x1xf32> to vector<1x1x1xf32>
    %cst_15 = arith.constant dense<0.000000e+00> : vector<1x2xf32>
    %59 = vector.multi_reduction <add>, %29, %cst_15 [2] : vector<1x2x128xf32> to vector<1x2xf32>
    %60 = vector.shape_cast %59 : vector<1x2xf32> to vector<1x2x1xf32>
    %cst_16 = arith.constant dense<0.000000e+00> : vector<1x1xf32>
    %61 = vector.multi_reduction <add>, %60, %cst_16 [1] : vector<1x2x1xf32> to vector<1x1xf32>
    %62 = vector.shape_cast %61 : vector<1x1xf32> to vector<1x1x1xf32>
    %cst_17 = arith.constant dense<0.000000e+00> : vector<1x2xf32>
    %63 = vector.multi_reduction <add>, %53, %cst_17 [2] : vector<1x2x128xf32> to vector<1x2xf32>
    %64 = vector.shape_cast %63 : vector<1x2xf32> to vector<1x2x1xf32>
    %cst_18 = arith.constant dense<0.000000e+00> : vector<1x1xf32>
    %65 = vector.multi_reduction <add>, %64, %cst_18 [1] : vector<1x2x1xf32> to vector<1x1xf32>
    %66 = vector.shape_cast %65 : vector<1x1xf32> to vector<1x1x1xf32>
    %c2_i32 = arith.constant 2 : i32
    %67 = vector.broadcast %c2_i32 : i32 to vector<1x2x128xi32>
    %68 = arith.cmpi eq, %4, %67 : vector<1x2x128xi32>
    %69 = arith.extui %68 : vector<1x2x128xi1> to vector<1x2x128xi32>
    %70 = arith.sitofp %69 : vector<1x2x128xi32> to vector<1x2x128xf32>
    %71 = arith.mulf %30, %70 : vector<1x2x128xf32>
    %cst_19 = arith.constant dense<0.000000e+00> : vector<1x2xf32>
    %72 = vector.multi_reduction <add>, %71, %cst_19 [2] : vector<1x2x128xf32> to vector<1x2xf32>
    %73 = vector.shape_cast %72 : vector<1x2xf32> to vector<1x2x1xf32>
    %cst_20 = arith.constant dense<0.000000e+00> : vector<1x1xf32>
    %74 = vector.multi_reduction <add>, %73, %cst_20 [1] : vector<1x2x1xf32> to vector<1x1xf32>
    %75 = vector.shape_cast %74 : vector<1x1xf32> to vector<1x1x1xf32>
    %cst_21 = arith.constant dense<0.000000e+00> : vector<1x2xf32>
    %76 = vector.multi_reduction <add>, %30, %cst_21 [2] : vector<1x2x128xf32> to vector<1x2xf32>
    %77 = vector.shape_cast %76 : vector<1x2xf32> to vector<1x2x1xf32>
    %cst_22 = arith.constant dense<0.000000e+00> : vector<1x1xf32>
    %78 = vector.multi_reduction <add>, %77, %cst_22 [1] : vector<1x2x1xf32> to vector<1x1xf32>
    %79 = vector.shape_cast %78 : vector<1x1xf32> to vector<1x1x1xf32>
    %cst_23 = arith.constant dense<0.000000e+00> : vector<1x2xf32>
    %80 = vector.multi_reduction <add>, %70, %cst_23 [2] : vector<1x2x128xf32> to vector<1x2xf32>
    %81 = vector.shape_cast %80 : vector<1x2xf32> to vector<1x2x1xf32>
    %cst_24 = arith.constant dense<0.000000e+00> : vector<1x1xf32>
    %82 = vector.multi_reduction <add>, %81, %cst_24 [1] : vector<1x2x1xf32> to vector<1x1xf32>
    %83 = vector.shape_cast %82 : vector<1x1xf32> to vector<1x1x1xf32>
    %c3_i32 = arith.constant 3 : i32
    %84 = vector.broadcast %c3_i32 : i32 to vector<1x2x128xi32>
    %85 = arith.cmpi eq, %4, %84 : vector<1x2x128xi32>
    %86 = arith.extui %85 : vector<1x2x128xi1> to vector<1x2x128xi32>
    %87 = arith.sitofp %86 : vector<1x2x128xi32> to vector<1x2x128xf32>
    %88 = arith.mulf %31, %87 : vector<1x2x128xf32>
    %cst_25 = arith.constant dense<0.000000e+00> : vector<1x2xf32>
    %89 = vector.multi_reduction <add>, %88, %cst_25 [2] : vector<1x2x128xf32> to vector<1x2xf32>
    %90 = vector.shape_cast %89 : vector<1x2xf32> to vector<1x2x1xf32>
    %cst_26 = arith.constant dense<0.000000e+00> : vector<1x1xf32>
    %91 = vector.multi_reduction <add>, %90, %cst_26 [1] : vector<1x2x1xf32> to vector<1x1xf32>
    %92 = vector.shape_cast %91 : vector<1x1xf32> to vector<1x1x1xf32>
    %cst_27 = arith.constant dense<0.000000e+00> : vector<1x2xf32>
    %93 = vector.multi_reduction <add>, %31, %cst_27 [2] : vector<1x2x128xf32> to vector<1x2xf32>
    %94 = vector.shape_cast %93 : vector<1x2xf32> to vector<1x2x1xf32>
    %cst_28 = arith.constant dense<0.000000e+00> : vector<1x1xf32>
    %95 = vector.multi_reduction <add>, %94, %cst_28 [1] : vector<1x2x1xf32> to vector<1x1xf32>
    %96 = vector.shape_cast %95 : vector<1x1xf32> to vector<1x1x1xf32>
    %cst_29 = arith.constant dense<0.000000e+00> : vector<1x2xf32>
    %97 = vector.multi_reduction <add>, %87, %cst_29 [2] : vector<1x2x128xf32> to vector<1x2xf32>
    %98 = vector.shape_cast %97 : vector<1x2xf32> to vector<1x2x1xf32>
    %cst_30 = arith.constant dense<0.000000e+00> : vector<1x1xf32>
    %99 = vector.multi_reduction <add>, %98, %cst_30 [1] : vector<1x2x1xf32> to vector<1x1xf32>
    %100 = vector.shape_cast %99 : vector<1x1xf32> to vector<1x1x1xf32>
    %c0_31 = arith.constant 0 : index
    %c0_32 = arith.constant 0 : index
    %c0_33 = arith.constant 0 : index
    %101 = vector.load %arg5[%c0_31, %c0_32, %c0_33] : memref<1x4x1xf32, #tpu.memory_space<vmem>>, vector<1x4x1xf32>
    %cst_34 = arith.constant 0.000000e+00 : f32
    %102 = vector.broadcast %cst_34 : f32 to vector<1x4x1xf32>
    %c0_i32_35 = arith.constant 0 : i32
    %103 = vector.broadcast %c0_i32_35 : i32 to vector<1x4x1xi32>
    %104 = arith.cmpi eq, %32, %103 : vector<1x4x1xi32>
    %105 = vector.shape_cast %41 : vector<1x1x1xf32> to vector<1x1x1xf32>
    %106 = vector.broadcast %105 : vector<1x1x1xf32> to vector<1x4x1xf32>
    %107 = arith.select %104, %106, %102 : vector<1x4x1xi1>, vector<1x4x1xf32>
    %c1_i32_36 = arith.constant 1 : i32
    %108 = vector.broadcast %c1_i32_36 : i32 to vector<1x4x1xi32>
    %109 = arith.cmpi eq, %32, %108 : vector<1x4x1xi32>
    %110 = vector.shape_cast %58 : vector<1x1x1xf32> to vector<1x1x1xf32>
    %111 = vector.broadcast %110 : vector<1x1x1xf32> to vector<1x4x1xf32>
    %112 = arith.select %109, %111, %107 : vector<1x4x1xi1>, vector<1x4x1xf32>
    %c2_i32_37 = arith.constant 2 : i32
    %113 = vector.broadcast %c2_i32_37 : i32 to vector<1x4x1xi32>
    %114 = arith.cmpi eq, %32, %113 : vector<1x4x1xi32>
    %115 = vector.shape_cast %75 : vector<1x1x1xf32> to vector<1x1x1xf32>
    %116 = vector.broadcast %115 : vector<1x1x1xf32> to vector<1x4x1xf32>
    %117 = arith.select %114, %116, %112 : vector<1x4x1xi1>, vector<1x4x1xf32>
    %c3_i32_38 = arith.constant 3 : i32
    %118 = vector.broadcast %c3_i32_38 : i32 to vector<1x4x1xi32>
    %119 = arith.cmpi eq, %32, %118 : vector<1x4x1xi32>
    %120 = vector.shape_cast %92 : vector<1x1x1xf32> to vector<1x1x1xf32>
    %121 = vector.broadcast %120 : vector<1x1x1xf32> to vector<1x4x1xf32>
    %122 = arith.select %119, %121, %117 : vector<1x4x1xi1>, vector<1x4x1xf32>
    %123 = arith.addf %101, %122 : vector<1x4x1xf32>
    %c0_39 = arith.constant 0 : index
    %c0_40 = arith.constant 0 : index
    %c0_41 = arith.constant 0 : index
    %124 = vector.load %arg5[%c0_39, %c0_40, %c0_41] : memref<1x4x1xf32, #tpu.memory_space<vmem>>, vector<1x4x1xf32>
    tpu.vector_store %arg5[%c0_39, %c0_40, %c0_41], %123 {strides = array<i32>} : memref<1x4x1xf32, #tpu.memory_space<vmem>>, vector<1x4x1xf32>,
    %c0_42 = arith.constant 0 : index
    %c0_43 = arith.constant 0 : index
    %c0_44 = arith.constant 0 : index
    %125 = vector.load %arg6[%c0_42, %c0_43, %c0_44] : memref<1x4x1xf32, #tpu.memory_space<vmem>>, vector<1x4x1xf32>
    %cst_45 = arith.constant 0.000000e+00 : f32
    %126 = vector.broadcast %cst_45 : f32 to vector<1x4x1xf32>
    %c0_i32_46 = arith.constant 0 : i32
    %127 = vector.broadcast %c0_i32_46 : i32 to vector<1x4x1xi32>
    %128 = arith.cmpi eq, %32, %127 : vector<1x4x1xi32>
    %129 = vector.shape_cast %45 : vector<1x1x1xf32> to vector<1x1x1xf32>
    %130 = vector.broadcast %129 : vector<1x1x1xf32> to vector<1x4x1xf32>
    %131 = arith.select %128, %130, %126 : vector<1x4x1xi1>, vector<1x4x1xf32>
    %c1_i32_47 = arith.constant 1 : i32
    %132 = vector.broadcast %c1_i32_47 : i32 to vector<1x4x1xi32>
    %133 = arith.cmpi eq, %32, %132 : vector<1x4x1xi32>
    %134 = vector.shape_cast %62 : vector<1x1x1xf32> to vector<1x1x1xf32>
    %135 = vector.broadcast %134 : vector<1x1x1xf32> to vector<1x4x1xf32>
    %136 = arith.select %133, %135, %131 : vector<1x4x1xi1>, vector<1x4x1xf32>
    %c2_i32_48 = arith.constant 2 : i32
    %137 = vector.broadcast %c2_i32_48 : i32 to vector<1x4x1xi32>
    %138 = arith.cmpi eq, %32, %137 : vector<1x4x1xi32>
    %139 = vector.shape_cast %79 : vector<1x1x1xf32> to vector<1x1x1xf32>
    %140 = vector.broadcast %139 : vector<1x1x1xf32> to vector<1x4x1xf32>
    %141 = arith.select %138, %140, %136 : vector<1x4x1xi1>, vector<1x4x1xf32>
    %c3_i32_49 = arith.constant 3 : i32
    %142 = vector.broadcast %c3_i32_49 : i32 to vector<1x4x1xi32>
    %143 = arith.cmpi eq, %32, %142 : vector<1x4x1xi32>
    %144 = vector.shape_cast %96 : vector<1x1x1xf32> to vector<1x1x1xf32>
    %145 = vector.broadcast %144 : vector<1x1x1xf32> to vector<1x4x1xf32>
    %146 = arith.select %143, %145, %141 : vector<1x4x1xi1>, vector<1x4x1xf32>
    %147 = arith.addf %125, %146 : vector<1x4x1xf32>
    %c0_50 = arith.constant 0 : index
    %c0_51 = arith.constant 0 : index
    %c0_52 = arith.constant 0 : index
    %148 = vector.load %arg6[%c0_50, %c0_51, %c0_52] : memref<1x4x1xf32, #tpu.memory_space<vmem>>, vector<1x4x1xf32>
    tpu.vector_store %arg6[%c0_50, %c0_51, %c0_52], %147 {strides = array<i32>} : memref<1x4x1xf32, #tpu.memory_space<vmem>>, vector<1x4x1xf32>,
    %c0_53 = arith.constant 0 : index
    %c0_54 = arith.constant 0 : index
    %c0_55 = arith.constant 0 : index
    %149 = vector.load %arg7[%c0_53, %c0_54, %c0_55] : memref<1x4x1xf32, #tpu.memory_space<vmem>>, vector<1x4x1xf32>
    %cst_56 = arith.constant 0.000000e+00 : f32
    %150 = vector.broadcast %cst_56 : f32 to vector<1x4x1xf32>
    %c0_i32_57 = arith.constant 0 : i32
    %151 = vector.broadcast %c0_i32_57 : i32 to vector<1x4x1xi32>
    %152 = arith.cmpi eq, %32, %151 : vector<1x4x1xi32>
    %153 = vector.shape_cast %49 : vector<1x1x1xf32> to vector<1x1x1xf32>
    %154 = vector.broadcast %153 : vector<1x1x1xf32> to vector<1x4x1xf32>
    %155 = arith.select %152, %154, %150 : vector<1x4x1xi1>, vector<1x4x1xf32>
    %c1_i32_58 = arith.constant 1 : i32
    %156 = vector.broadcast %c1_i32_58 : i32 to vector<1x4x1xi32>
    %157 = arith.cmpi eq, %32, %156 : vector<1x4x1xi32>
    %158 = vector.shape_cast %66 : vector<1x1x1xf32> to vector<1x1x1xf32>
    %159 = vector.broadcast %158 : vector<1x1x1xf32> to vector<1x4x1xf32>
    %160 = arith.select %157, %159, %155 : vector<1x4x1xi1>, vector<1x4x1xf32>
    %c2_i32_59 = arith.constant 2 : i32
    %161 = vector.broadcast %c2_i32_59 : i32 to vector<1x4x1xi32>
    %162 = arith.cmpi eq, %32, %161 : vector<1x4x1xi32>
    %163 = vector.shape_cast %83 : vector<1x1x1xf32> to vector<1x1x1xf32>
    %164 = vector.broadcast %163 : vector<1x1x1xf32> to vector<1x4x1xf32>
    %165 = arith.select %162, %164, %160 : vector<1x4x1xi1>, vector<1x4x1xf32>
    %c3_i32_60 = arith.constant 3 : i32
    %166 = vector.broadcast %c3_i32_60 : i32 to vector<1x4x1xi32>
    %167 = arith.cmpi eq, %32, %166 : vector<1x4x1xi32>
    %168 = vector.shape_cast %100 : vector<1x1x1xf32> to vector<1x1x1xf32>
    %169 = vector.broadcast %168 : vector<1x1x1xf32> to vector<1x4x1xf32>
    %170 = arith.select %167, %169, %165 : vector<1x4x1xi1>, vector<1x4x1xf32>
    %171 = arith.addf %149, %170 : vector<1x4x1xf32>
    %c0_61 = arith.constant 0 : index
    %c0_62 = arith.constant 0 : index
    %c0_63 = arith.constant 0 : index
    %172 = vector.load %arg7[%c0_61, %c0_62, %c0_63] : memref<1x4x1xf32, #tpu.memory_space<vmem>>, vector<1x4x1xf32>
    tpu.vector_store %arg7[%c0_61, %c0_62, %c0_63], %171 {strides = array<i32>} : memref<1x4x1xf32, #tpu.memory_space<vmem>>, vector<1x4x1xf32>,
    %c0_i32_64 = arith.constant 0 : i32
    %173 = arith.cmpi eq, %arg1, %c0_i32_64 : i32
    %174 = arith.extui %173 : i1 to i32
    %c0_i32_65 = arith.constant 0 : i32
    %175 = arith.cmpi ne, %174, %c0_i32_65 : i32
    scf.if %175 {
      %c0_66 = arith.constant 0 : index
      %c0_67 = arith.constant 0 : index
      %c0_68 = arith.constant 0 : index
      %176 = vector.load %arg6[%c0_66, %c0_67, %c0_68] : memref<1x4x1xf32, #tpu.memory_space<vmem>>, vector<1x4x1xf32>
      %c0_69 = arith.constant 0 : index
      %c0_70 = arith.constant 0 : index
      %c0_71 = arith.constant 0 : index
      %177 = vector.load %arg5[%c0_69, %c0_70, %c0_71] : memref<1x4x1xf32, #tpu.memory_space<vmem>>, vector<1x4x1xf32>
      %cst_72 = arith.constant 0.00999999977 : f32
      %178 = vector.broadcast %cst_72 : f32 to vector<1x4x1xf32>
      %179 = arith.addf %177, %178 : vector<1x4x1xf32>
      %c0_73 = arith.constant 0 : index
      %c0_74 = arith.constant 0 : index
      %c0_75 = arith.constant 0 : index
      %180 = vector.load %arg7[%c0_73, %c0_74, %c0_75] : memref<1x4x1xf32, #tpu.memory_space<vmem>>, vector<1x4x1xf32>
      %181 = arith.addf %176, %180 : vector<1x4x1xf32>
      %cst_76 = arith.constant 0.00999999977 : f32
      %182 = vector.broadcast %cst_76 : f32 to vector<1x4x1xf32>
      %183 = arith.addf %181, %182 : vector<1x4x1xf32>
      %cst_77 = arith.constant 2.000000e+00 : f32
      %184 = vector.broadcast %cst_77 : f32 to vector<1x4x1xf32>
      %185 = arith.mulf %184, %179 : vector<1x4x1xf32>
      %186 = arith.divf %185, %183 : vector<1x4x1xf32>
      %c0_78 = arith.constant 0 : index
      %c0_79 = arith.constant 0 : index
      %c0_80 = arith.constant 0 : index
      %187 = vector.load %arg4[%c0_78, %c0_79, %c0_80] : memref<1x4x1xf32, #tpu.memory_space<vmem>>, vector<1x4x1xf32>
      tpu.vector_store %arg4[%c0_78, %c0_79, %c0_80], %186 {strides = array<i32>} : memref<1x4x1xf32, #tpu.memory_space<vmem>>, vector<1x4x1xf32>,
    } else {
    }
    return
  }
  func.func @transform_0(%arg0: i32, %arg1: i32) -> (i32, i32, i32, i32) {
    %c0_i32 = arith.constant 0 : i32
    %c0_i32_0 = arith.constant 0 : i32
    %c0_i32_1 = arith.constant 0 : i32
    return %arg0, %c0_i32, %arg1, %c0_i32_0 : i32, i32, i32, i32
  }
  func.func @transform_1(%arg0: i32, %arg1: i32) -> (i32, i32, i32) {
    %c0_i32 = arith.constant 0 : i32
    %c0_i32_0 = arith.constant 0 : i32
    return %arg0, %arg1, %c0_i32 : i32, i32, i32
  }
  func.func @transform_2(%arg0: i32, %arg1: i32) -> (i32, i32, i32) {
    %c0_i32 = arith.constant 0 : i32
    %c0_i32_0 = arith.constant 0 : i32
    %c0_i32_1 = arith.constant 0 : i32
    return %arg0, %c0_i32, %c0_i32_0 : i32, i32, i32
  }
}

</mosaic_0001>

<llo_original>
// kernel: tpu_custom_call.1
$region0: #{tpu_custom_call.1}
  #allocation0 [shape = 'u32[]', space=smem, size = 0x4, offset = 0x4, fixed_abs, tag = 'smem constant byte address 0x4 - core index']
  #allocation1 [shape = 'u32[72,128]{1,0:T(1,128)}', space=vmem, size = 0x9000, scoped, tag = 'internal scratch']
  #allocation2 [shape = 'f32[1,4,1]{2,1,0:T(4,128)}', space=vmem, size = 0x800, scoped, tag = 'scratch operand']
  #allocation3 [shape = 'f32[1,4,1]{2,1,0:T(4,128)}', space=vmem, size = 0x800, scoped, tag = 'scratch operand']
  #allocation4 [shape = 'f32[1,4,1]{2,1,0:T(4,128)}', space=vmem, size = 0x800, scoped, tag = 'scratch operand']
  %s0 = inlined_call_operand.hbm [shape: f32[2,4,2,128], index: 0, kind: input, shape index: {}]
  %s1 = inlined_call_operand.hbm [shape: s32[2,2,128], index: 1, kind: input, shape index: {}]
  %s2 = inlined_call_operand.vmem [shape: f32[2,4,1], index: 2, kind: output, shape index: {}]
  %s3 = sld [smem:[#allocation0]]
  $region57: #{tpu_custom_call.1} parent=0
    _
  %s5 = ssub.s32 1, %s3
  %s6 = scalar_select 0, %s5, %s3
  $region1: #{tpu_custom_call.1} parent=0
    #allocation5 [shape = 'u8[8192]{0}', space=vmem, size = 0x2000, scoped, tag = 'input window, operand 0']
    #allocation6 [shape = 's32[2]{0}', space=sflag, size = 0x8, scoped, tag = 'scoped memory for tpu_custom_call.1']
    #allocation7 [shape = 'u8[2048]{0}', space=vmem, size = 0x800, scoped, tag = 'input window, operand 1']
    #allocation8 [shape = 's32[2]{0}', space=sflag, size = 0x8, scoped, tag = 'scoped memory for tpu_custom_call.1']
    %7 = vsyncpa [#allocation6], 0
    %s8 = scalar_lea.sflag [#allocation6], 1
    %9 = vsyncpa %s8, 0
    %10 = vsyncpa [#allocation8], 0
    %s11 = scalar_lea.sflag [#allocation8], 1
    %12 = vsyncpa %s11, 0
    loop: start=0, step=1, limit=4
    $region2: #{tpu_custom_call.1} parent=1 // loop_pre_header
      _
    $region3: #{tpu_custom_call.1} parent=1 // loop_header
      %s14 = sphi 0, %s18
      %p15 = scmp.ge.s32.totalorder %s14, 4
      %s21 = sphi 0, %s33
      %s22 = sphi 0, %s29
      %s23 = sphi 0, %s21
      %s24 = sphi 0, %s22
      %s25 = sphi 0, %s23
      %s26 = sphi 0, %s24
      %s38 = sphi 0, %s40
      %s41 = sphi 0, %s38
      %s42 = sphi 0, %s41
      %s58 = sphi 0, %s42
      %s66 = sphi 0, %s68
      %s69 = sphi 0, %s66
      %s70 = sphi 0, %s69
      %s86 = sphi 0, %s70
      %s92 = sphi 0, %s94
      %s95 = sphi 0, %s92
      %s96 = sphi 0, %s95
      %s112 = sphi 0, %s96
    $region4: #{tpu_custom_call.1} parent=1 // loop_header_branch
      %17 = sbr.rel (%p15) target = $region8
    $region5: #{tpu_custom_call.1} parent=1 // loop_body
      %s19 = ssub.s32 %s14, 1
      %s20 = ssub.s32 %s14, 2
      %s27 = sadd.s32 1, %s22
      %p28 = scmp.ge.s32.totalorder %s27, 1
      %s29 = scalar_select %p28, 0, %s27
      %s30 = sadd.s32 1, %s21
      %s31 = scalar_select %p28, %s30, %s21
      %p32 = scmp.ge.s32.totalorder %s31, 2
      %s33 = scalar_select %p32, 0, %s31
      %s34 = ssub.s32 %s21, %s33
      %s35 = ssub.s32 %s22, %s29
      %s36 = sor.u32 %s34, %s35
      %p37 = scmp.eq.s32.totalorder %s36, 0
      %s39 = sadd.s32 %s38, 1
      %s40 = scalar_select %p37, %s38, %s39
      %p43 = pneg %p37
      %p44 = scmp.eq.s32.totalorder %s14, 1
      %p45 = por %p43, %p44
      %p46 = scmp.ne.s32.totalorder %s38, %s41
      %p47 = scmp.eq.s32.totalorder %s14, 0
      %p48 = por %p46, %p47
      %p49 = scmp.ne.s32.totalorder %s38, %s41
      %p50 = scmp.eq.s32.totalorder %s19, 1
      %p51 = por %p49, %p50
      %p52 = scmp.ne.s32.totalorder %s41, %s42
      %p53 = scmp.eq.s32.totalorder %s19, 0
      %p54 = por %p52, %p53
      %p55 = scmp.ne.s32.totalorder %s41, %s42
      %p56 = scmp.eq.s32.totalorder %s20, 1
      %p57 = por %p55, %p56
      %p59 = scmp.ne.s32.totalorder %s42, %s58
      %p60 = scmp.eq.s32.totalorder %s20, 0
      %p61 = por %p59, %p60
      %s62 = ssub.s32 %s21, %s33
      %s63 = ssub.s32 %s22, %s29
      %s64 = sor.u32 %s62, %s63
      %p65 = scmp.eq.s32.totalorder %s64, 0
      %s67 = sadd.s32 %s66, 1
      %s68 = scalar_select %p65, %s66, %s67
      %p71 = pneg %p65
      %p72 = scmp.eq.s32.totalorder %s14, 1
      %p73 = por %p71, %p72
      %p74 = scmp.ne.s32.totalorder %s66, %s69
      %p75 = scmp.eq.s32.totalorder %s14, 0
      %p76 = por %p74, %p75
      %p77 = scmp.ne.s32.totalorder %s66, %s69
      %p78 = scmp.eq.s32.totalorder %s19, 1
      %p79 = por %p77, %p78
      %p80 = scmp.ne.s32.totalorder %s69, %s70
      %p81 = scmp.eq.s32.totalorder %s19, 0
      %p82 = por %p80, %p81
      %p83 = scmp.ne.s32.totalorder %s69, %s70
      %p84 = scmp.eq.s32.totalorder %s20, 1
      %p85 = por %p83, %p84
      %p87 = scmp.ne.s32.totalorder %s70, %s86
      %p88 = scmp.eq.s32.totalorder %s20, 0
      %p89 = por %p87, %p88
      %s90 = ssub.s32 %s21, %s33
      %p91 = scmp.eq.s32.totalorder %s90, 0
      %s93 = sadd.s32 %s92, 1
      %s94 = scalar_select %p91, %s92, %s93
      %p97 = pneg %p91
      %p98 = scmp.eq.s32.totalorder %s14, 1
      %p99 = por %p97, %p98
      %p100 = scmp.ne.s32.totalorder %s92, %s95
      %p101 = scmp.eq.s32.totalorder %s14, 0
      %p102 = por %p100, %p101
      %p103 = scmp.ne.s32.totalorder %s92, %s95
      %p104 = scmp.eq.s32.totalorder %s19, 1
      %p105 = por %p103, %p104
      %p106 = scmp.ne.s32.totalorder %s95, %s96
      %p107 = scmp.eq.s32.totalorder %s19, 0
      %p108 = por %p106, %p107
      %p109 = scmp.ne.s32.totalorder %s95, %s96
      %p110 = scmp.eq.s32.totalorder %s20, 1
      %p111 = por %p109, %p110
      %p113 = scmp.ne.s32.totalorder %s96, %s112
      %p114 = scmp.eq.s32.totalorder %s20, 0
      %p115 = por %p113, %p114
      %p116 = scmp.le.s32.totalorder 1, %s14
      %p117 = scmp.lt.s32.totalorder %s14, 3
      %p118 = pnand %p116, %p117
      %p119 = pneg %p118
      // Predicated region
      $region9: #{tpu_custom_call.1} parent=5 // pred_check
        _
      $region10: #{tpu_custom_call.1} parent=5 // pred_check_branch
        %121 = sbr.rel (%p118) target = $region12
      $region11: #{tpu_custom_call.1} parent=5 // pred_region
        %s122 = ssub.s32 %s14, 1
      $region12: #{tpu_custom_call.1} parent=5 // pred_fallthru
        _
      %p123 = scmp.lt.s32.totalorder %s14, 2
      // Predicated region
      $region13: #{tpu_custom_call.1} parent=5 // pred_check
        %p124 = pneg %p123
      $region14: #{tpu_custom_call.1} parent=5 // pred_check_branch
        %126 = sbr.rel (%p124) target = $region16
      $region15: #{tpu_custom_call.1} parent=5 // pred_region
        // Predicated region
        $region17: #{tpu_custom_call.1} parent=15 // pred_check
          %p127 = pneg %p48
        $region18: #{tpu_custom_call.1} parent=15 // pred_check_branch
          %129 = sbr.rel (%p127) target = $region20
        $region19: #{tpu_custom_call.1} parent=15 // pred_region
          %s130 = sand.u32 %s38, 1
          %s131 = scalar_lea.sflag [#allocation6], %s130
          %s132 = sand.u32 %s38, 1
          %s133 = smul.addr %s132, 8
          %s134 = scalar_lea.vmem [#allocation5], %s133
          %136 = vsyncadd %s131, 0
          %s137 = smul.addr %s21, 4
          %s138 = sadd.s32 %s22, %s137
          %s139 = smul.addr %s138, 2
          %s140 = scalar_lea.hbm %s0, %s139
          %s141 = sshll.u32 %s140, 4
          %s142 = int_to_ptr.hbm [resolvable:$true] %s141
          %s143 = sshll.u32 %s134, 4
          %s144 = int_to_ptr.vmem [resolvable:$true] %s143
          %149 = dma.hbm_to_vmem [thread:$0]  %s142, 128, %s144, %s131, 32, 32, 2
        $region20: #{tpu_custom_call.1} parent=15 // pred_fallthru
          _
        // Predicated region
        $region21: #{tpu_custom_call.1} parent=15 // pred_check
          %p150 = pneg %p76
        $region22: #{tpu_custom_call.1} parent=15 // pred_check_branch
          %152 = sbr.rel (%p150) target = $region24
        $region23: #{tpu_custom_call.1} parent=15 // pred_region
          %s153 = sand.u32 %s66, 1
          %s154 = scalar_lea.sflag [#allocation8], %s153
          %s155 = sand.u32 %s66, 1
          %s156 = smul.addr %s155, 2
          %s157 = scalar_lea.vmem [#allocation7], %s156
          %159 = vsyncadd %s154, 0
          %s160 = sadd.s32 %s22, %s21
          %s161 = smul.addr %s160, 2
          %s162 = scalar_lea.hbm %s1, %s161
          %s164 = sshll.u32 %s162, 4
          %s165 = int_to_ptr.hbm [resolvable:$true] %s164
          %s166 = sshll.u32 %s157, 4
          %s167 = int_to_ptr.vmem [resolvable:$true] %s166
          %169 = dma.hbm_to_vmem [thread:$0]  %s165, 32, %s167, %s154
        $region24: #{tpu_custom_call.1} parent=15 // pred_fallthru
          _
      $region16: #{tpu_custom_call.1} parent=5 // pred_fallthru
        _
      %p170 = scmp.le.s32.totalorder 1, %s14
      %p171 = scmp.lt.s32.totalorder %s14, 3
      %p172 = pnand %p170, %p171
      %p173 = pneg %p172
      // Predicated region
      $region25: #{tpu_custom_call.1} parent=5 // pred_check
        _
      $region26: #{tpu_custom_call.1} parent=5 // pred_check_branch
        %175 = sbr.rel (%p172) target = $region28
      $region27: #{tpu_custom_call.1} parent=5 // pred_region
        %s176 = ssub.s32 %s14, 1
        %s177 = sand.u32 %s41, 1
        %s178 = scalar_lea.sflag [#allocation6], %s177
        %s179 = sand.u32 %s41, 1
        %s180 = smul.addr %s179, 8
        %s181 = scalar_lea.vmem [#allocation5], %s180
        // Predicated region
        $region29: #{tpu_custom_call.1} parent=27 // pred_check
          %p182 = pneg %p54
        $region30: #{tpu_custom_call.1} parent=27 // pred_check_branch
          %184 = sbr.rel (%p182) target = $region32
        $region31: #{tpu_custom_call.1} parent=27 // pred_region
          %186 = dma.done %s178, 128
        $region32: #{tpu_custom_call.1} parent=27 // pred_fallthru
          _
        %s187 = sand.u32 %s69, 1
        %s188 = scalar_lea.sflag [#allocation8], %s187
        %s189 = sand.u32 %s69, 1
        %s190 = smul.addr %s189, 2
        %s191 = scalar_lea.vmem [#allocation7], %s190
        // Predicated region
        $region33: #{tpu_custom_call.1} parent=27 // pred_check
          %p192 = pneg %p82
        $region34: #{tpu_custom_call.1} parent=27 // pred_check_branch
          %194 = sbr.rel (%p192) target = $region36
        $region35: #{tpu_custom_call.1} parent=27 // pred_region
          %196 = dma.done %s188, 32
        $region36: #{tpu_custom_call.1} parent=27 // pred_fallthru
          _
        %s197 = sand.u32 %s41, 1
        %s198 = scalar_lea.sflag [#allocation6], %s197
        %s199 = sand.u32 %s41, 1
        %s200 = smul.addr %s199, 8
        %s201 = scalar_lea.vmem [#allocation5], %s200
        %p202 = pneg %p54
        %p203 = pneg %p51
        %s204 = sand.u32 %s69, 1
        %s205 = scalar_lea.sflag [#allocation8], %s204
        %s206 = sand.u32 %s69, 1
        %s207 = smul.addr %s206, 2
        %s208 = scalar_lea.vmem [#allocation7], %s207
        %p209 = pneg %p82
        %p210 = pneg %p79
        %p211 = pneg %p108
        %p212 = pneg %p105
        %p213 = scmp.lt.s32.totalorder %s23, 1
        %s214 = scalar_select %p213, %s23, 1
        %s215 = smul.addr %s214, 4
        %s216 = scalar_lea.vmem %s2, %s215
        %p217 = scmp.lt.s32.totalorder %s23, 1
        %s218 = scalar_select %p217, %s23, 1
        %s219 = smul.addr %s218, 4
        %s220 = scalar_lea.vmem %s2, %s219
        %p221 = scmp.eq.s32.totalorder %s24, 0
        // Predicated region
        $region37: #{tpu_custom_call.1} parent=27 // pred_check
          %p222 = pneg %p221
        $region38: #{tpu_custom_call.1} parent=27 // pred_check_branch
          %224 = sbr.rel (%p222) target = $region40
        $region39: #{tpu_custom_call.1} parent=27 // pred_region
          %vm225 = vcmask 3072
          %226 = vst.msk [vmem:[#allocation2] sm:$0xf] %vm225, 0.0
          %227 = vst.msk [vmem:[#allocation3] sm:$0xf] %vm225, 0.0
          %228 = vst.msk [vmem:[#allocation4] sm:$0xf] %vm225, 0.0
        $region40: #{tpu_custom_call.1} parent=27 // pred_fallthru
          _
        %v229 = vld [vmem:[%s181] sm:$0x3]
        %v230 = vld [vmem:[%s181 + $0x2] sm:$0x3]
        %v231 = vld [vmem:[%s181 + $0x4] sm:$0x3]
        %v232 = vld [vmem:[%s181 + $0x6] sm:$0x3]
        %v233 = vld [vmem:[%s191] sm:$0x3]
        %v234 = vmax.f32 %v229, %v230
        %v235 = vmax.f32 %v234, %v231
        %v236 = vmax.f32 %v235, %v232
        %v237 = vsub.f32 %v229, %v236
        %v238 = vmul.f32 %v237, 1.442695
        %v239 = vpow.pop %v238
        %v240 = vsub.f32 %v230, %v236
        %v241 = vmul.f32 %v240, 1.442695
        %v242 = vpow.pop %v241
        %v243 = vsub.f32 %v231, %v236
        %v244 = vmul.f32 %v243, 1.442695
        %v245 = vpow.pop %v244
        %v246 = vsub.f32 %v232, %v236
        %v247 = vmul.f32 %v246, 1.442695
        %v248 = vpow.pop %v247
        %v249 = vadd.f32 %v239, %v242
        %v250 = vadd.f32 %v249, %v245
        %v251 = vadd.f32 %v250, %v248
        %v252 = vrcp.pop %v251
        %v253 = vmul.f32 %v239, %v252
        %v254 = vmul.f32 %v242, %v252
        %v255 = vmul.f32 %v245, %v252
        %v256 = vmul.f32 %v248, %v252
        %v257 = vlaneseq
        %v258 = vshrl.u32 %v257, 7
        %vm259 = vcmp.eq.s32.totalorder %v233, 0
        %v260 = vsel %vm259, 1, 0
        %v261 = vcvt.s32.f32 %v260
        %v262 = vmul.f32 %v253, %v261
        %vm263 = vcmask 1041408
        %v264 = vsel %vm263, %v262, 0.0
        %265 = vadd.xlane.f32.xlu0 %v264
        %v266 = vpop.xlane.xlu0 %265
        %v267 = vsel %vm263, %v266, 0.0
        %v268 = vrot.slane %v267, 4
        %v269 = vadd.f32 %v267, %v268
        %v270 = vrot.slane %v269, 2
        %v271 = vadd.f32 %v269, %v270
        %v272 = vrot.slane %v271, 1
        %v273 = vadd.f32 %v271, %v272
        %v274 = vsel %vm263, %v253, 0.0
        %275 = vadd.xlane.f32.xlu0 %v274
        %v276 = vpop.xlane.xlu0 %275
        %v277 = vsel %vm263, %v276, 0.0
        %v278 = vrot.slane %v277, 4
        %v279 = vadd.f32 %v277, %v278
        %v280 = vrot.slane %v279, 2
        %v281 = vadd.f32 %v279, %v280
        %v282 = vrot.slane %v281, 1
        %v283 = vadd.f32 %v281, %v282
        %v284 = vsel %vm263, %v261, 0.0
        %285 = vadd.xlane.f32.xlu0 %v284
        %v286 = vpop.xlane.xlu0 %285
        %v287 = vsel %vm263, %v286, 0.0
        %v288 = vrot.slane %v287, 4
        %v289 = vadd.f32 %v287, %v288
        %v290 = vrot.slane %v289, 2
        %v291 = vadd.f32 %v289, %v290
        %v292 = vrot.slane %v291, 1
        %v293 = vadd.f32 %v291, %v292
        %vm294 = vcmp.eq.s32.totalorder %v233, 1
        %v295 = vsel %vm294, 1, 0
        %v296 = vcvt.s32.f32 %v295
        %v297 = vmul.f32 %v254, %v296
        %v298 = vsel %vm263, %v297, 0.0
        %299 = vadd.xlane.f32.xlu0 %v298
        %v300 = vpop.xlane.xlu0 %299
        %v301 = vsel %vm263, %v300, 0.0
        %v302 = vrot.slane %v301, 4
        %v303 = vadd.f32 %v301, %v302
        %v304 = vrot.slane %v303, 2
        %v305 = vadd.f32 %v303, %v304
        %v306 = vrot.slane %v305, 1
        %v307 = vadd.f32 %v305, %v306
        %v308 = vsel %vm263, %v254, 0.0
        %309 = vadd.xlane.f32.xlu0 %v308
        %v310 = vpop.xlane.xlu0 %309
        %v311 = vsel %vm263, %v310, 0.0
        %v312 = vrot.slane %v311, 4
        %v313 = vadd.f32 %v311, %v312
        %v314 = vrot.slane %v313, 2
        %v315 = vadd.f32 %v313, %v314
        %v316 = vrot.slane %v315, 1
        %v317 = vadd.f32 %v315, %v316
        %v318 = vsel %vm263, %v296, 0.0
        %319 = vadd.xlane.f32.xlu0 %v318
        %v320 = vpop.xlane.xlu0 %319
        %v321 = vsel %vm263, %v320, 0.0
        %v322 = vrot.slane %v321, 4
        %v323 = vadd.f32 %v321, %v322
        %v324 = vrot.slane %v323, 2
        %v325 = vadd.f32 %v323, %v324
        %v326 = vrot.slane %v325, 1
        %v327 = vadd.f32 %v325, %v326
        %vm328 = vcmp.eq.s32.totalorder %v233, 2
        %v329 = vsel %vm328, 1, 0
        %v330 = vcvt.s32.f32 %v329
        %v331 = vmul.f32 %v255, %v330
        %v332 = vsel %vm263, %v331, 0.0
        %333 = vadd.xlane.f32.xlu0 %v332
        %v334 = vpop.xlane.xlu0 %333
        %v335 = vsel %vm263, %v334, 0.0
        %v336 = vrot.slane %v335, 4
        %v337 = vadd.f32 %v335, %v336
        %v338 = vrot.slane %v337, 2
        %v339 = vadd.f32 %v337, %v338
        %v340 = vrot.slane %v339, 1
        %v341 = vadd.f32 %v339, %v340
        %v342 = vsel %vm263, %v255, 0.0
        %343 = vadd.xlane.f32.xlu0 %v342
        %v344 = vpop.xlane.xlu0 %343
        %v345 = vsel %vm263, %v344, 0.0
        %v346 = vrot.slane %v345, 4
        %v347 = vadd.f32 %v345, %v346
        %v348 = vrot.slane %v347, 2
        %v349 = vadd.f32 %v347, %v348
        %v350 = vrot.slane %v349, 1
        %v351 = vadd.f32 %v349, %v350
        %v352 = vsel %vm263, %v330, 0.0
        %353 = vadd.xlane.f32.xlu0 %v352
        %v354 = vpop.xlane.xlu0 %353
        %v355 = vsel %vm263, %v354, 0.0
        %v356 = vrot.slane %v355, 4
        %v357 = vadd.f32 %v355, %v356
        %v358 = vrot.slane %v357, 2
        %v359 = vadd.f32 %v357, %v358
        %v360 = vrot.slane %v359, 1
        %v361 = vadd.f32 %v359, %v360
        %vm362 = vcmp.eq.s32.totalorder %v233, 3
        %v363 = vsel %vm362, 1, 0
        %v364 = vcvt.s32.f32 %v363
        %v365 = vmul.f32 %v256, %v364
        %v366 = vsel %vm263, %v365, 0.0
        %367 = vadd.xlane.f32.xlu0 %v366
        %v368 = vpop.xlane.xlu0 %367
        %v369 = vsel %vm263, %v368, 0.0
        %v370 = vrot.slane %v369, 4
        %v371 = vadd.f32 %v369, %v370
        %v372 = vrot.slane %v371, 2
        %v373 = vadd.f32 %v371, %v372
        %v374 = vrot.slane %v373, 1
        %v375 = vadd.f32 %v373, %v374
        %v376 = vsel %vm263, %v256, 0.0
        %377 = vadd.xlane.f32.xlu0 %v376
        %v378 = vpop.xlane.xlu0 %377
        %v379 = vsel %vm263, %v378, 0.0
        %v380 = vrot.slane %v379, 4
        %v381 = vadd.f32 %v379, %v380
        %v382 = vrot.slane %v381, 2
        %v383 = vadd.f32 %v381, %v382
        %v384 = vrot.slane %v383, 1
        %v385 = vadd.f32 %v383, %v384
        %v386 = vsel %vm263, %v364, 0.0
        %387 = vadd.xlane.f32.xlu0 %v386
        %v388 = vpop.xlane.xlu0 %387
        %v389 = vsel %vm263, %v388, 0.0
        %v390 = vrot.slane %v389, 4
        %v391 = vadd.f32 %v389, %v390
        %v392 = vrot.slane %v391, 2
        %v393 = vadd.f32 %v391, %v392
        %v394 = vrot.slane %v393, 1
        %v395 = vadd.f32 %v393, %v394
        %v396 = vld [vmem:[#allocation2] sm:$0xf]
        %vm397 = vcmp.eq.s32.totalorder %v258, 0
        %v398 = vsel %vm397, %v273, 0.0
        %vm399 = vcmp.eq.s32.totalorder %v258, 1
        %v400 = vsel %vm399, %v307, %v398
        %vm401 = vcmp.eq.s32.totalorder %v258, 2
        %v402 = vsel %vm401, %v341, %v400
        %vm403 = vcmp.eq.s32.totalorder %v258, 3
        %v404 = vsel %vm403, %v375, %v402
        %v405 = vadd.f32 %v396, %v404
        %vm406 = vcmask 3072
        %407 = vst.msk [vmem:[#allocation2] sm:$0xf] %vm406, %v405
        %v408 = vld [vmem:[#allocation3] sm:$0xf]
        %v409 = vsel %vm397, %v283, 0.0
        %v410 = vsel %vm399, %v317, %v409
        %v411 = vsel %vm401, %v351, %v410
        %v412 = vsel %vm403, %v385, %v411
        %v413 = vadd.f32 %v408, %v412
        %414 = vst.msk [vmem:[#allocation3] sm:$0xf] %vm406, %v413
        %v415 = vld [vmem:[#allocation4] sm:$0xf]
        %v416 = vsel %vm397, %v293, 0.0
        %v417 = vsel %vm399, %v327, %v416
        %v418 = vsel %vm401, %v361, %v417
        %v419 = vsel %vm403, %v395, %v418
        %v420 = vadd.f32 %v415, %v419
        %421 = vst.msk [vmem:[#allocation4] sm:$0xf] %vm406, %v420
        // Predicated region
        $region41: #{tpu_custom_call.1} parent=27 // pred_check
          %p422 = pneg %p221
        $region42: #{tpu_custom_call.1} parent=27 // pred_check_branch
          %424 = sbr.rel (%p422) target = $region44
        $region43: #{tpu_custom_call.1} parent=27 // pred_region
          %v425 = vld [vmem:[#allocation3] sm:$0xf]
          %v426 = vld [vmem:[#allocation2] sm:$0xf]
          %v427 = vadd.f32 %v426, 0.01
          %v428 = vld [vmem:[#allocation4] sm:$0xf]
          %v429 = vadd.f32 %v425, %v428
          %v430 = vadd.f32 %v429, 0.01
          %v431 = vmul.f32 %v427, 2.0
          %v432 = vrcp.pop %v430
          %v433 = vmul.f32 %v430, %v432
          %v434 = vsub.f32 1.0, %v433
          %v435 = vmul.f32 %v432, %v434
          %v436 = vadd.f32 %v432, %v435
          %vm437 = vweird.f32 %v430
          %vm438 = vweird.f32 %v432
          %vm439 = vmor %vm437, %vm438
          %v440 = vsel %vm439, %v432, %v436
          %v441 = vand.u32 2147483647, %v430
          %vm442 = vcmp.eq.f32.partialorder %v441, 8.507059e+37
          %v443 = vand.u32 %v430, 2147483648
          %v444 = vor.u32 1.1754944e-38, %v443
          %v445 = vsel %vm442, %v444, %v440
          %v446 = vmul.f32 %v431, %v445
          %447 = vst.msk [vmem:[%s220] sm:$0xf] %vm406, %v446
        $region44: #{tpu_custom_call.1} parent=27 // pred_fallthru
          _
        %p448 = scmp.lt.s32.totalorder %s23, 1
        %s449 = scalar_select %p448, %s23, 1
        %s450 = smul.addr %s449, 4
        %s451 = scalar_lea.vmem %s2, %s450
        // Predicated region
        $region45: #{tpu_custom_call.1} parent=27 // pred_check
          %p452 = pneg %p105
        $region46: #{tpu_custom_call.1} parent=27 // pred_check_branch
          %454 = sbr.rel (%p452) target = $region48
        $region47: #{tpu_custom_call.1} parent=27 // pred_region
          _
        $region48: #{tpu_custom_call.1} parent=27 // pred_fallthru
          _
      $region28: #{tpu_custom_call.1} parent=5 // pred_fallthru
        _
      %p455 = scmp.le.s32.totalorder 2, %s14
      // Predicated region
      $region49: #{tpu_custom_call.1} parent=5 // pred_check
        %p456 = pneg %p455
      $region50: #{tpu_custom_call.1} parent=5 // pred_check_branch
        %458 = sbr.rel (%p456) target = $region52
      $region51: #{tpu_custom_call.1} parent=5 // pred_region
        %s459 = ssub.s32 %s14, 2
        // Predicated region
        $region53: #{tpu_custom_call.1} parent=51 // pred_check
          %p460 = pneg %p111
        $region54: #{tpu_custom_call.1} parent=51 // pred_check_branch
          %462 = sbr.rel (%p460) target = $region56
        $region55: #{tpu_custom_call.1} parent=51 // pred_region
          %p463 = scmp.lt.s32.totalorder %s25, 1
          %s464 = scalar_select %p463, %s25, 1
          %s465 = smul.addr %s464, 4
          %s466 = scalar_lea.vmem %s2, %s465
        $region56: #{tpu_custom_call.1} parent=51 // pred_fallthru
          _
      $region52: #{tpu_custom_call.1} parent=5 // pred_fallthru
        _
    $region6: #{tpu_custom_call.1} parent=1 // loop_footer
      %s18 = sadd.s32 1, %s14
    $region7: #{tpu_custom_call.1} parent=1 // loop_footer_branch
      %13 = sbr.rel target = $region3
    $region8: #{tpu_custom_call.1} parent=1 // loop_exit
      _
    %467 = vsyncpa [#allocation6], 1
    %s468 = scalar_lea.sflag [#allocation6], 1
    %469 = vsyncpa %s468, 1
    %470 = vsyncpa [#allocation8], 1
    %s471 = scalar_lea.sflag [#allocation8], 1
    %472 = vsyncpa %s471, 1

</llo_original>
